<compile_context>
chip_gen: v7x
topology: tpu7x:2x2x1
jax: 0.10.0
libtpu: 0.0.40
codegen_flags: <defaults>
</compile_context>

<pallas_src>
import jax
import jax.numpy as jnp
from jax import lax
from jax.experimental import pallas as pl
from jax.experimental.pallas import tpu as pltpu

_SUB = 8      # sublane packing factor for the batch dim
_LANE = 128   # lane width


def _tpu_info():
    """Returns (vmem_capacity_bytes, num_tensorcores_guess), safely."""
    vmem_cap = 64 * 1024 * 1024
    try:
        vmem_cap = int(pltpu.get_tpu_info().vmem_capacity_bytes)
    except Exception:
        pass
    vmem_cap = max(32 * 1024 * 1024, min(vmem_cap, 128 * 1024 * 1024))
    n_tc = 1
    try:
        kind = jax.devices()[0].device_kind.lower()
        # Chips with 2 TensorCores visible to one Pallas program.
        if any(t in kind for t in ("v7", "7x", "v5p", "v4")):
            n_tc = 2
            # Be conservative: treat reported capacity as per-chip and clamp
            # to the 64 MiB per-core VMEM of v7x.
            vmem_cap = min(vmem_cap, 64 * 1024 * 1024)
    except Exception:
        pass
    return vmem_cap, n_tc


def _make_dice_kernel(bn, cols, k_per_split, needs_mask):
    n_chunks = bn // _LANE
    unroll = min(8, n_chunks)

    def kernel(p_ref, g_ref, m_ref, a_ref, b_ref, c_ref, a_acc, b_acc, c_acc):
        k = pl.program_id(1)

        @pl.when(k == 0)
        def _init():
            a_acc[...] = jnp.zeros_like(a_acc)
            b_acc[...] = jnp.zeros_like(b_acc)
            c_acc[...] = jnp.zeros_like(c_acc)

        # Global column offset of this block (only needed for tail masking).
        block_base = (pl.program_id(0) * k_per_split + k) * bn

        def chunk(j, carry):
            off = pl.multiple_of(j * _LANE, _LANE)
            p = p_ref[:, pl.ds(off, _LANE)].astype(jnp.float32)
            g = g_ref[:, pl.ds(off, _LANE)].astype(jnp.float32)
            m = m_ref[:, pl.ds(off, _LANE)].astype(jnp.float32)
            pm = p * m
            gm = g * m
            if needs_mask:
                col = block_base + off + lax.broadcasted_iota(
                    jnp.int32, (1, _LANE), 1)
                valid = col < cols
                # where() (not multiply) so stale/garbage tail data, even
                # NaN/Inf, cannot pollute the accumulators.
                pm = jnp.where(valid, pm, 0.0)
                gm = jnp.where(valid, gm, 0.0)
            # Pure VPU accumulation into narrow (R, 128) f32 accumulators.
            a_acc[...] += pm * gm
            b_acc[...] += pm * pm
            c_acc[...] += gm * gm
            return carry

        lax.fori_loop(0, n_chunks, chunk, 0, unroll=unroll)

        @pl.when(k == pl.num_programs(1) - 1)
        def _finalize():
            # Lane-dense writeback; the 128 -> 1 reduce happens in XLA.
            a_ref[...] = a_acc[...]
            b_ref[...] = b_acc[...]
            c_ref[...] = c_acc[...]

    return kernel


def dice_loss(pre_score, gt_score, train_mask, eps=1e-6):
    """Pallas implementation of DiceLoss.forward. Returns a scalar (f32)."""
    B = pre_score.shape[0]
    # Flatten (B, C, H, W) -> (B, N), same semantics as torch .view(B, -1).
    p = pre_score.reshape(B, -1)
    g = gt_score.reshape(B, -1)
    m = train_mask.reshape(B, -1)
    N = p.shape[1]
    R = B * _SUB

    if N % _SUB != 0:
        # TODO(synk): this fallback materializes a padded copy (extra HBM
        # round-trip); keep N a multiple of 8 upstream to avoid it.
        pad = _SUB - N % _SUB
        p = jnp.pad(p, ((0, 0), (0, pad)))
        g = jnp.pad(g, ((0, 0), (0, pad)))
        m = jnp.pad(m, ((0, 0), (0, pad)))
        N = N + pad
    cols = N // _SUB
    # Sublane packing: free metadata reshape (no HBM copy).
    p = p.reshape(R, cols)
    g = g.reshape(R, cols)
    m = m.reshape(R, cols)

    vmem_cap, n_tc = _tpu_info()

    # ---- VMEM-budgeted, lane-aligned column block width --------------------
    # Only the 3 inputs x 2 pipeline buffers count per column now; the
    # accumulators are a fixed 3 * R * 128 f32.
    isizes = int(p.dtype.itemsize) + int(g.dtype.itemsize) + int(m.dtype.itemsize)
    per_col = R * 2 * isizes
    budget = vmem_cap // 2
    bn_cap = max(_LANE, (budget // per_col) // _LANE * _LANE)
    bn_cap = min(bn_cap, 32 * 1024)      # past the roofline knee already

    cols_pad128 = pl.cdiv(cols, _LANE) * _LANE
    if bn_cap >= cols_pad128:
        bn = cols_pad128
        n_col_blocks = 1
    else:
        n_col_blocks = pl.cdiv(cols, bn_cap)
        # Rebalance so the ragged tail is at most ~one lane-tile per block.
        bn = pl.cdiv(pl.cdiv(cols, n_col_blocks), _LANE) * _LANE

    # Generation-conditional 2-way split: only when 2 TensorCores exist.
    n_split = 2 if (n_tc >= 2 and n_col_blocks >= 2) else 1
    k_per_split = pl.cdiv(n_col_blocks, n_split)
    covered = n_split * k_per_split * bn
    needs_mask = covered != cols                       # ragged tail / dummy blocks
    clamp_idx = (n_split * k_per_split) != n_col_blocks  # dummy blocks exist

    if clamp_idx:
        def in_map(s, k, _kps=k_per_split, _last=n_col_blocks - 1):
            # Dummy blocks re-read the last valid block; the kernel masks
            # their contribution to exactly zero.
            return (0, jnp.minimum(s * _kps + k, _last))
    else:
        def in_map(s, k, _kps=k_per_split):
            return (0, s * _kps + k)

    in_spec = pl.BlockSpec((R, bn), in_map)
    out_spec = pl.BlockSpec((None, R, _LANE), lambda s, k: (s, 0, 0))
    out_sds = jax.ShapeDtypeStruct((n_split, R, _LANE), jnp.float32)

    # VMEM limit = computed usage + headroom (not a flat fraction of physical).
    tile_bytes = 2 * R * bn * isizes                     # 3 inputs, double-buffered
    fixed_bytes = 3 * R * _LANE * 4 + 3 * 2 * R * _LANE * 4  # accs + dbl-buf outputs
    vmem_limit = int((tile_bytes + fixed_bytes) * 1.25) + (8 << 20)
    vmem_limit = max(32 << 20, min(vmem_limit, int(vmem_cap * 0.9)))

    kernel = _make_dice_kernel(bn, cols, k_per_split, needs_mask)

    a_out, b_out, c_out = pl.pallas_call(
        kernel,
        out_shape=(out_sds, out_sds, out_sds),
        grid_spec=pltpu.PrefetchScalarGridSpec(
            num_scalar_prefetch=0,
            grid=(n_split, k_per_split),
            in_specs=[in_spec, in_spec, in_spec],
            out_specs=[out_spec, out_spec, out_spec],
            scratch_shapes=[
                pltpu.VMEM((R, _LANE), jnp.float32),
                pltpu.VMEM((R, _LANE), jnp.float32),
                pltpu.VMEM((R, _LANE), jnp.float32),
            ],
        ),
        compiler_params=pltpu.CompilerParams(
            dimension_semantics=("parallel", "arbitrary"),
            vmem_limit_bytes=vmem_limit,
        ),
    )(p, g, m)

    # Tiny O(B*128) epilogue in plain JAX: combine split/lane/sublane partials.
    a = a_out.sum(axis=(0, 2)).reshape(B, _SUB).sum(axis=1)
    b = b_out.sum(axis=(0, 2)).reshape(B, _SUB).sum(axis=1) + eps
    c = c_out.sum(axis=(0, 2)).reshape(B, _SUB).sum(axis=1) + eps
    d = 2.0 * a / (b + c)
    return 1.0 - jnp.mean(d)


def dice_loss_ref(pre_score, gt_score, train_mask, eps=1e-6):
    B = pre_score.shape[0]
    p = pre_score.reshape(B, -1).astype(jnp.float32)
    g = gt_score.reshape(B, -1).astype(jnp.float32)
    m = train_mask.reshape(B, -1).astype(jnp.float32)
    p = p * m
    g = g * m
    a = jnp.sum(p * g, axis=1)
    b = jnp.sum(p * p, axis=1) + eps
    c = jnp.sum(g * g, axis=1) + eps
    d = 2 * a / (b + c)
    return 1 - jnp.mean(d)


if __name__ == "__main__":
    key = jax.random.PRNGKey(0)
    k1, k2, k3 = jax.random.split(key, 3)

    B, C, H, W = 2, 4, 16, 16   # NCHW, flattened per-batch to N = 1024
    pre_score = jax.nn.sigmoid(jax.random.normal(k1, (B, C, H, W), jnp.float32))
    # gt / mask are {0,1}: produce them narrow (bf16) at the source — the
    # kernel streams them as-is and upcasts to f32 after load (exact for 0/1).
    gt_score = (jax.random.uniform(k2, (B, C, H, W)) > 0.5).astype(jnp.bfloat16)
    train_mask = (jax.random.uniform(k3, (B, C, H, W)) > 0.2).astype(jnp.bfloat16)

    out = jax.block_until_ready(dice_loss(pre_score, gt_score, train_mask))
    ref = jax.block_until_ready(dice_loss_ref(pre_score, gt_score, train_mask))

    assert jnp.allclose(out, ref, rtol=1e-5, atol=1e-6), (out, ref)
    print("KERNEL_OK")
</pallas_src>

<mosaic_0001>
module attributes {stable_mosaic.version = 11 : i64} {
  func.func @kernel(%arg0: i32, %arg1: i32, %arg2: memref<16x128xf32, #tpu.memory_space<vmem>>, %arg3: memref<16x128xbf16, #tpu.memory_space<vmem>>, %arg4: memref<16x128xbf16, #tpu.memory_space<vmem>>, %arg5: memref<1x16x128xf32, #tpu.memory_space<vmem>>, %arg6: memref<1x16x128xf32, #tpu.memory_space<vmem>>, %arg7: memref<1x16x128xf32, #tpu.memory_space<vmem>>, %arg8: memref<16x128xf32, #tpu.memory_space<vmem>>, %arg9: memref<16x128xf32, #tpu.memory_space<vmem>>, %arg10: memref<16x128xf32, #tpu.memory_space<vmem>>) attributes {dimension_semantics = [#tpu.dimension_semantics<parallel>, #tpu.dimension_semantics<arbitrary>], iteration_bounds = array<i64: 1, 1>, scalar_prefetch = 0 : i64, scratch_operands = 3 : i64, tpu.core_type = #tpu.core_type<tc>, window_params = [{transform_indices = @transform_0, window_bounds = array<i64: 16, 128>}, {transform_indices = @transform_1, window_bounds = array<i64: 16, 128>}, {transform_indices = @transform_2, window_bounds = array<i64: 16, 128>}, {transform_indices = @transform_3, window_bounds = array<i64: 1, 16, 128>}, {transform_indices = @transform_4, window_bounds = array<i64: 1, 16, 128>}, {transform_indices = @transform_5, window_bounds = array<i64: 1, 16, 128>}]} {
    %c0_i32 = arith.constant 0 : i32
    %0 = arith.cmpi eq, %arg1, %c0_i32 : i32
    %1 = arith.extui %0 : i1 to i32
    %c0_i32_0 = arith.constant 0 : i32
    %2 = arith.cmpi ne, %1, %c0_i32_0 : i32
    scf.if %2 {
      %cst = arith.constant 0.000000e+00 : f32
      %30 = vector.broadcast %cst : f32 to vector<16x128xf32>
      %c0_18 = arith.constant 0 : index
      %c0_19 = arith.constant 0 : index
      %31 = vector.load %arg8[%c0_18, %c0_19] : memref<16x128xf32, #tpu.memory_space<vmem>>, vector<16x128xf32>
      tpu.vector_store %arg8[%c0_18, %c0_19], %30 {strides = array<i32>} : memref<16x128xf32, #tpu.memory_space<vmem>>, vector<16x128xf32>,
      %cst_20 = arith.constant 0.000000e+00 : f32
      %32 = vector.broadcast %cst_20 : f32 to vector<16x128xf32>
      %c0_21 = arith.constant 0 : index
      %c0_22 = arith.constant 0 : index
      %33 = vector.load %arg9[%c0_21, %c0_22] : memref<16x128xf32, #tpu.memory_space<vmem>>, vector<16x128xf32>
      tpu.vector_store %arg9[%c0_21, %c0_22], %32 {strides = array<i32>} : memref<16x128xf32, #tpu.memory_space<vmem>>, vector<16x128xf32>,
      %cst_23 = arith.constant 0.000000e+00 : f32
      %34 = vector.broadcast %cst_23 : f32 to vector<16x128xf32>
      %c0_24 = arith.constant 0 : index
      %c0_25 = arith.constant 0 : index
      %35 = vector.load %arg10[%c0_24, %c0_25] : memref<16x128xf32, #tpu.memory_space<vmem>>, vector<16x128xf32>
      tpu.vector_store %arg10[%c0_24, %c0_25], %34 {strides = array<i32>} : memref<16x128xf32, #tpu.memory_space<vmem>>, vector<16x128xf32>,
    } else {
    }
    %c0_i32_1 = arith.constant 0 : i32
    %c128_i32 = arith.constant 128 : i32
    %3 = arith.muli %c0_i32_1, %c128_i32 : i32
    %4 = tpu.assume_multiple %3, 128 : i32
    %c0 = arith.constant 0 : index
    %5 = arith.index_cast %4 : i32 to index
    %6 = vector.load %arg2[%c0, %5] : memref<16x128xf32, #tpu.memory_space<vmem>>, vector<16x128xf32>
    %c0_2 = arith.constant 0 : index
    %7 = arith.index_cast %4 : i32 to index
    %8 = vector.load %arg3[%c0_2, %7] : memref<16x128xbf16, #tpu.memory_space<vmem>>, vector<16x128xbf16>
    %9 = arith.extf %8 : vector<16x128xbf16> to vector<16x128xf32>
    %c0_3 = arith.constant 0 : index
    %10 = arith.index_cast %4 : i32 to index
    %11 = vector.load %arg4[%c0_3, %10] : memref<16x128xbf16, #tpu.memory_space<vmem>>, vector<16x128xbf16>
    %12 = arith.extf %11 : vector<16x128xbf16> to vector<16x128xf32>
    %13 = arith.mulf %6, %12 : vector<16x128xf32>
    %14 = arith.mulf %9, %12 : vector<16x128xf32>
    %c0_4 = arith.constant 0 : index
    %c0_5 = arith.constant 0 : index
    %15 = vector.load %arg8[%c0_4, %c0_5] : memref<16x128xf32, #tpu.memory_space<vmem>>, vector<16x128xf32>
    %16 = arith.mulf %13, %14 : vector<16x128xf32>
    %17 = arith.addf %15, %16 : vector<16x128xf32>
    %c0_6 = arith.constant 0 : index
    %c0_7 = arith.constant 0 : index
    %18 = vector.load %arg8[%c0_6, %c0_7] : memref<16x128xf32, #tpu.memory_space<vmem>>, vector<16x128xf32>
    tpu.vector_store %arg8[%c0_6, %c0_7], %17 {strides = array<i32>} : memref<16x128xf32, #tpu.memory_space<vmem>>, vector<16x128xf32>,
    %c0_8 = arith.constant 0 : index
    %c0_9 = arith.constant 0 : index
    %19 = vector.load %arg9[%c0_8, %c0_9] : memref<16x128xf32, #tpu.memory_space<vmem>>, vector<16x128xf32>
    %20 = arith.mulf %13, %13 : vector<16x128xf32>
    %21 = arith.addf %19, %20 : vector<16x128xf32>
    %c0_10 = arith.constant 0 : index
    %c0_11 = arith.constant 0 : index
    %22 = vector.load %arg9[%c0_10, %c0_11] : memref<16x128xf32, #tpu.memory_space<vmem>>, vector<16x128xf32>
    tpu.vector_store %arg9[%c0_10, %c0_11], %21 {strides = array<i32>} : memref<16x128xf32, #tpu.memory_space<vmem>>, vector<16x128xf32>,
    %c0_12 = arith.constant 0 : index
    %c0_13 = arith.constant 0 : index
    %23 = vector.load %arg10[%c0_12, %c0_13] : memref<16x128xf32, #tpu.memory_space<vmem>>, vector<16x128xf32>
    %24 = arith.mulf %14, %14 : vector<16x128xf32>
    %25 = arith.addf %23, %24 : vector<16x128xf32>
    %c0_14 = arith.constant 0 : index
    %c0_15 = arith.constant 0 : index
    %26 = vector.load %arg10[%c0_14, %c0_15] : memref<16x128xf32, #tpu.memory_space<vmem>>, vector<16x128xf32>
    tpu.vector_store %arg10[%c0_14, %c0_15], %25 {strides = array<i32>} : memref<16x128xf32, #tpu.memory_space<vmem>>, vector<16x128xf32>,
    %c1_i32 = arith.constant 1 : i32
    %c0_i32_16 = arith.constant 0 : i32
    %27 = arith.cmpi eq, %arg1, %c0_i32_16 : i32
    %28 = arith.extui %27 : i1 to i32
    %c0_i32_17 = arith.constant 0 : i32
    %29 = arith.cmpi ne, %28, %c0_i32_17 : i32
    scf.if %29 {
      %c0_18 = arith.constant 0 : index
      %c0_19 = arith.constant 0 : index
      %30 = vector.load %arg8[%c0_18, %c0_19] : memref<16x128xf32, #tpu.memory_space<vmem>>, vector<16x128xf32>
      %c0_20 = arith.constant 0 : index
      %c0_21 = arith.constant 0 : index
      %c0_22 = arith.constant 0 : index
      %31 = vector.load %arg5[%c0_20, %c0_21, %c0_22] : memref<1x16x128xf32, #tpu.memory_space<vmem>>, vector<1x16x128xf32>
      %32 = vector.shape_cast %31 : vector<1x16x128xf32> to vector<16x128xf32>
      %33 = vector.shape_cast %30 : vector<16x128xf32> to vector<1x16x128xf32>
      tpu.vector_store %arg5[%c0_20, %c0_21, %c0_22], %33 {strides = array<i32>} : memref<1x16x128xf32, #tpu.memory_space<vmem>>, vector<1x16x128xf32>,
      %c0_23 = arith.constant 0 : index
      %c0_24 = arith.constant 0 : index
      %34 = vector.load %arg9[%c0_23, %c0_24] : memref<16x128xf32, #tpu.memory_space<vmem>>, vector<16x128xf32>
      %c0_25 = arith.constant 0 : index
      %c0_26 = arith.constant 0 : index
      %c0_27 = arith.constant 0 : index
      %35 = vector.load %arg6[%c0_25, %c0_26, %c0_27] : memref<1x16x128xf32, #tpu.memory_space<vmem>>, vector<1x16x128xf32>
      %36 = vector.shape_cast %35 : vector<1x16x128xf32> to vector<16x128xf32>
      %37 = vector.shape_cast %34 : vector<16x128xf32> to vector<1x16x128xf32>
      tpu.vector_store %arg6[%c0_25, %c0_26, %c0_27], %37 {strides = array<i32>} : memref<1x16x128xf32, #tpu.memory_space<vmem>>, vector<1x16x128xf32>,
      %c0_28 = arith.constant 0 : index
      %c0_29 = arith.constant 0 : index
      %38 = vector.load %arg10[%c0_28, %c0_29] : memref<16x128xf32, #tpu.memory_space<vmem>>, vector<16x128xf32>
      %c0_30 = arith.constant 0 : index
      %c0_31 = arith.constant 0 : index
      %c0_32 = arith.constant 0 : index
      %39 = vector.load %arg7[%c0_30, %c0_31, %c0_32] : memref<1x16x128xf32, #tpu.memory_space<vmem>>, vector<1x16x128xf32>
      %40 = vector.shape_cast %39 : vector<1x16x128xf32> to vector<16x128xf32>
      %41 = vector.shape_cast %38 : vector<16x128xf32> to vector<1x16x128xf32>
      tpu.vector_store %arg7[%c0_30, %c0_31, %c0_32], %41 {strides = array<i32>} : memref<1x16x128xf32, #tpu.memory_space<vmem>>, vector<1x16x128xf32>,
    } else {
    }
    return
  }
  func.func @transform_0(%arg0: i32, %arg1: i32) -> (i32, i32) {
    %c1_i32 = arith.constant 1 : i32
    %0 = arith.muli %arg0, %c1_i32 : i32
    %1 = arith.addi %0, %arg1 : i32
    %c0_i32 = arith.constant 0 : i32
    %c0_i32_0 = arith.constant 0 : i32
    return %c0_i32, %1 : i32, i32
  }
  func.func @transform_1(%arg0: i32, %arg1: i32) -> (i32, i32) {
    %c1_i32 = arith.constant 1 : i32
    %0 = arith.muli %arg0, %c1_i32 : i32
    %1 = arith.addi %0, %arg1 : i32
    %c0_i32 = arith.constant 0 : i32
    %c0_i32_0 = arith.constant 0 : i32
    return %c0_i32, %1 : i32, i32
  }
  func.func @transform_2(%arg0: i32, %arg1: i32) -> (i32, i32) {
    %c1_i32 = arith.constant 1 : i32
    %0 = arith.muli %arg0, %c1_i32 : i32
    %1 = arith.addi %0, %arg1 : i32
    %c0_i32 = arith.constant 0 : i32
    %c0_i32_0 = arith.constant 0 : i32
    return %c0_i32, %1 : i32, i32
  }
  func.func @transform_3(%arg0: i32, %arg1: i32) -> (i32, i32, i32) {
    %c0_i32 = arith.constant 0 : i32
    %c0_i32_0 = arith.constant 0 : i32
    %c0_i32_1 = arith.constant 0 : i32
    return %arg0, %c0_i32, %c0_i32_0 : i32, i32, i32
  }
  func.func @transform_4(%arg0: i32, %arg1: i32) -> (i32, i32, i32) {
    %c0_i32 = arith.constant 0 : i32
    %c0_i32_0 = arith.constant 0 : i32
    %c0_i32_1 = arith.constant 0 : i32
    return %arg0, %c0_i32, %c0_i32_0 : i32, i32, i32
  }
  func.func @transform_5(%arg0: i32, %arg1: i32) -> (i32, i32, i32) {
    %c0_i32 = arith.constant 0 : i32
    %c0_i32_0 = arith.constant 0 : i32
    %c0_i32_1 = arith.constant 0 : i32
    return %arg0, %c0_i32, %c0_i32_0 : i32, i32, i32
  }
}

</mosaic_0001>

<llo_original>
// kernel: tpu_custom_call.1
$region0: #{tpu_custom_call.1}
  #allocation0 [shape = 'u32[]', space=smem, size = 0x4, offset = 0x4, fixed_abs, tag = 'smem constant byte address 0x4 - core index']
  #allocation1 [shape = 'u32[144,128]{1,0:T(1,128)}', space=vmem, size = 0x12000, scoped, tag = 'internal scratch']
  #allocation2 [shape = 'f32[16,128]{1,0:T(8,128)}', space=vmem, size = 0x2000, scoped, tag = 'scratch operand']
  #allocation3 [shape = 'f32[16,128]{1,0:T(8,128)}', space=vmem, size = 0x2000, scoped, tag = 'scratch operand']
  #allocation4 [shape = 'f32[16,128]{1,0:T(8,128)}', space=vmem, size = 0x2000, scoped, tag = 'scratch operand']
  %s0 = inlined_call_operand.hbm [shape: f32[16,128], index: 0, kind: input, shape index: {}]
  %s1 = inlined_call_operand.hbm [shape: bf16[16,128], index: 1, kind: input, shape index: {}]
  %s2 = inlined_call_operand.hbm [shape: bf16[16,128], index: 2, kind: input, shape index: {}]
  %s3 = inlined_call_operand.hbm [shape: f32[1,16,128], index: 3, kind: output, shape index: {0}]
  %s4 = inlined_call_operand.hbm [shape: f32[1,16,128], index: 4, kind: output, shape index: {1}]
  %s5 = inlined_call_operand.hbm [shape: f32[1,16,128], index: 5, kind: output, shape index: {2}]
  %6 = xla_tuple %s3, %s4, %s5
  %s7 = sld [smem:[#allocation0]]
  $region58: #{tpu_custom_call.1} parent=0
    _
  %s9 = ssub.s32 1, %s7
  %s10 = scalar_select 0, %s9, %s7
  $region1: #{tpu_custom_call.1} parent=0
    #allocation5 [shape = 'u8[8192]{0}', space=vmem, size = 0x2000, scoped, tag = 'input window, operand 0, single buffered']
    #allocation6 [shape = 's32[1]{0}', space=sflag, size = 0x4, scoped, tag = 'scoped memory for tpu_custom_call.1']
    #allocation7 [shape = 's32[1]{0}', space=sflag, size = 0x4, scoped, tag = 'scoped memory for tpu_custom_call.1']
    #allocation8 [shape = 'u8[4096]{0}', space=vmem, size = 0x1000, scoped, tag = 'input window, operand 1, single buffered']
    #allocation9 [shape = 's32[1]{0}', space=sflag, size = 0x4, scoped, tag = 'scoped memory for tpu_custom_call.1']
    #allocation10 [shape = 'u8[4096]{0}', space=vmem, size = 0x1000, scoped, tag = 'input window, operand 2, single buffered']
    #allocation11 [shape = 'u8[8192]{0}', space=vmem, size = 0x2000, scoped, tag = 'output window, operand 0, single buffered']
    #allocation12 [shape = 'u8[8192]{0}', space=vmem, size = 0x2000, scoped, tag = 'output window, operand 1, single buffered']
    #allocation13 [shape = 's32[1]{0}', space=sflag, size = 0x4, scoped, tag = 'scoped memory for tpu_custom_call.1']
    #allocation14 [shape = 'u8[8192]{0}', space=vmem, size = 0x2000, scoped, tag = 'output window, operand 2, single buffered']
    %11 = vsyncpa [#allocation6], 0
    %12 = vsyncpa [#allocation9], 0
    %13 = vsyncpa [#allocation7], 0
    %14 = vsyncpa [#allocation13], 0
    // Predicated region
    $region2: #{tpu_custom_call.1} parent=1 // pred_check
      _
    $region3: #{tpu_custom_call.1} parent=1 // pred_check_branch
      %16 = sbr.rel (0) target = $region5
    $region4: #{tpu_custom_call.1} parent=1 // pred_region
      %s17 = sadd.s32 0, 0
      %s19 = ssub.s32 256, 256
      %20 = vsyncadd [#allocation6], %s19
      %s21 = smul.addr %s17, 128
      %s22 = scalar_lea.hbm %s0, %s21
      %s23 = sshll.u32 [#allocation5], 4
      %s24 = int_to_ptr.vmem [resolvable:$true] %s23
      %29 = dma.hbm_to_vmem [thread:$0]  %s22, 256, %s24, [#allocation6], 128, 128, 8
    $region5: #{tpu_custom_call.1} parent=1 // pred_fallthru
      _
    // Predicated region
    $region6: #{tpu_custom_call.1} parent=1 // pred_check
      _
    $region7: #{tpu_custom_call.1} parent=1 // pred_check_branch
      %31 = sbr.rel (0) target = $region9
    $region8: #{tpu_custom_call.1} parent=1 // pred_region
      %s32 = sadd.s32 0, 0
      %s34 = ssub.s32 128, 128
      %35 = vsyncadd [#allocation9], %s34
      %s36 = smul.addr %s32, 64
      %s37 = scalar_lea.hbm %s1, %s36
      %s38 = sshll.u32 [#allocation8], 4
      %s39 = int_to_ptr.vmem [resolvable:$true] %s38
      %44 = dma.hbm_to_vmem [thread:$0]  %s37, 128, %s39, [#allocation9], 64, 64, 4
    $region9: #{tpu_custom_call.1} parent=1 // pred_fallthru
      _
    // Predicated region
    $region10: #{tpu_custom_call.1} parent=1 // pred_check
      _
    $region11: #{tpu_custom_call.1} parent=1 // pred_check_branch
      %46 = sbr.rel (0) target = $region13
    $region12: #{tpu_custom_call.1} parent=1 // pred_region
      %s47 = sadd.s32 0, 0
      %s49 = ssub.s32 128, 128
      %50 = vsyncadd [#allocation9], %s49
      %s51 = smul.addr %s47, 64
      %s52 = scalar_lea.hbm %s2, %s51
      %s53 = sshll.u32 [#allocation10], 4
      %s54 = int_to_ptr.vmem [resolvable:$true] %s53
      %59 = dma.hbm_to_vmem [thread:$0]  %s52, 128, %s54, [#allocation9], 64, 64, 4
    $region13: #{tpu_custom_call.1} parent=1 // pred_fallthru
      _
    // Predicated region
    $region14: #{tpu_custom_call.1} parent=1 // pred_check
      _
    $region15: #{tpu_custom_call.1} parent=1 // pred_check_branch
      %61 = sbr.rel (0) target = $region17
    $region16: #{tpu_custom_call.1} parent=1 // pred_region
      %62 = dma.done [#allocation6], 256
    $region17: #{tpu_custom_call.1} parent=1 // pred_fallthru
      _
    // Predicated region
    $region18: #{tpu_custom_call.1} parent=1 // pred_check
      _
    $region19: #{tpu_custom_call.1} parent=1 // pred_check_branch
      %64 = sbr.rel (0) target = $region21
    $region20: #{tpu_custom_call.1} parent=1 // pred_region
      %65 = dma.done [#allocation9], 128
    $region21: #{tpu_custom_call.1} parent=1 // pred_fallthru
      _
    // Predicated region
    $region22: #{tpu_custom_call.1} parent=1 // pred_check
      _
    $region23: #{tpu_custom_call.1} parent=1 // pred_check_branch
      %67 = sbr.rel (0) target = $region25
    $region24: #{tpu_custom_call.1} parent=1 // pred_region
      %68 = dma.done [#allocation9], 128
    $region25: #{tpu_custom_call.1} parent=1 // pred_fallthru
      _
    %s69 = sadd.s32 0, 0
    %s70 = sadd.s32 0, 0
    %s71 = sadd.s32 0, 0
    %p72 = scmp.eq.s32.totalorder 0, 0
    // Predicated region
    $region26: #{tpu_custom_call.1} parent=1 // pred_check
      %p73 = pneg %p72
    $region27: #{tpu_custom_call.1} parent=1 // pred_check_branch
      %75 = sbr.rel (%p73) target = $region29
    $region28: #{tpu_custom_call.1} parent=1 // pred_region
      %76 = vst [vmem:[#allocation2] sm:$0xff] 0.0
      %77 = vst [vmem:[#allocation2 + $0x8] sm:$0xff] 0.0
      %78 = vst [vmem:[#allocation3] sm:$0xff] 0.0
      %79 = vst [vmem:[#allocation3 + $0x8] sm:$0xff] 0.0
      %80 = vst [vmem:[#allocation4] sm:$0xff] 0.0
      %81 = vst [vmem:[#allocation4 + $0x8] sm:$0xff] 0.0
    $region29: #{tpu_custom_call.1} parent=1 // pred_fallthru
      _
    %v82 = vld [vmem:[#allocation5] sm:$0xff]
    %v83 = vld [vmem:[#allocation5 + $0x8] sm:$0xff]
    %v84 = vld [vmem:[#allocation8] sm:$0xf]
    %v85 = vld [vmem:[#allocation8 + $0x4] sm:$0xf]
    %v86 = vunpack.c.l.bf16 %v84
    %v87 = vunpack.c.l.bf16 %v85
    %v88 = vld [vmem:[#allocation10] sm:$0xf]
    %v89 = vld [vmem:[#allocation10 + $0x4] sm:$0xf]
    %v90 = vunpack.c.l.bf16 %v88
    %v91 = vunpack.c.l.bf16 %v89
    %v92 = vmul.f32 %v82, %v90
    %v93 = vmul.f32 %v83, %v91
    %v94 = vmul.f32 %v86, %v90
    %v95 = vmul.f32 %v87, %v91
    %v96 = vld [vmem:[#allocation2] sm:$0xff]
    %v97 = vld [vmem:[#allocation2 + $0x8] sm:$0xff]
    %v98 = vmul.f32 %v92, %v94
    %v99 = vmul.f32 %v93, %v95
    %v100 = vadd.f32 %v96, %v98
    %v101 = vadd.f32 %v97, %v99
    %102 = vst [vmem:[#allocation2] sm:$0xff] %v100
    %103 = vst [vmem:[#allocation2 + $0x8] sm:$0xff] %v101
    %v104 = vld [vmem:[#allocation3] sm:$0xff]
    %v105 = vld [vmem:[#allocation3 + $0x8] sm:$0xff]
    %v106 = vmul.f32 %v92, %v92
    %v107 = vmul.f32 %v93, %v93
    %v108 = vadd.f32 %v104, %v106
    %v109 = vadd.f32 %v105, %v107
    %110 = vst [vmem:[#allocation3] sm:$0xff] %v108
    %111 = vst [vmem:[#allocation3 + $0x8] sm:$0xff] %v109
    %v112 = vld [vmem:[#allocation4] sm:$0xff]
    %v113 = vld [vmem:[#allocation4 + $0x8] sm:$0xff]
    %v114 = vmul.f32 %v94, %v94
    %v115 = vmul.f32 %v95, %v95
    %v116 = vadd.f32 %v112, %v114
    %v117 = vadd.f32 %v113, %v115
    %118 = vst [vmem:[#allocation4] sm:$0xff] %v116
    %119 = vst [vmem:[#allocation4 + $0x8] sm:$0xff] %v117
    // Predicated region
    $region30: #{tpu_custom_call.1} parent=1 // pred_check
      %p120 = pneg %p72
    $region31: #{tpu_custom_call.1} parent=1 // pred_check_branch
      %122 = sbr.rel (%p120) target = $region33
    $region32: #{tpu_custom_call.1} parent=1 // pred_region
      %v123 = vld [vmem:[#allocation2] sm:$0xff]
      %v124 = vld [vmem:[#allocation2 + $0x8] sm:$0xff]
      %125 = vst [vmem:[#allocation11] sm:$0xff] %v123
      %126 = vst [vmem:[#allocation11 + $0x8] sm:$0xff] %v124
      %v127 = vld [vmem:[#allocation3] sm:$0xff]
      %v128 = vld [vmem:[#allocation3 + $0x8] sm:$0xff]
      %129 = vst [vmem:[#allocation12] sm:$0xff] %v127
      %130 = vst [vmem:[#allocation12 + $0x8] sm:$0xff] %v128
      %v131 = vld [vmem:[#allocation4] sm:$0xff]
      %v132 = vld [vmem:[#allocation4 + $0x8] sm:$0xff]
      %133 = vst [vmem:[#allocation14] sm:$0xff] %v131
      %134 = vst [vmem:[#allocation14 + $0x8] sm:$0xff] %v132
    $region33: #{tpu_custom_call.1} parent=1 // pred_fallthru
      _
    // Predicated region
    $region34: #{tpu_custom_call.1} parent=1 // pred_check
      _
    $region35: #{tpu_custom_call.1} parent=1 // pred_check_branch
      %136 = sbr.rel (0) target = $region37
    $region36: #{tpu_custom_call.1} parent=1 // pred_region
      %s138 = ssub.s32 256, 256
      %139 = vsyncadd [#allocation7], %s138
      %s140 = sshll.u32 [#allocation11], 4
      %s141 = int_to_ptr.vmem [resolvable:$true] %s140
      %146 = dma.vmem_to_hbm [thread:$0]  %s141, 256, %s3, [#allocation7], 128, 128, 8
    $region37: #{tpu_custom_call.1} parent=1 // pred_fallthru
      _
    // Predicated region
    $region38: #{tpu_custom_call.1} parent=1 // pred_check
      _
    $region39: #{tpu_custom_call.1} parent=1 // pred_check_branch
      %148 = sbr.rel (0) target = $region41
    $region40: #{tpu_custom_call.1} parent=1 // pred_region
      %s150 = ssub.s32 256, 256
      %151 = vsyncadd [#allocation13], %s150
      %s152 = sshll.u32 [#allocation12], 4
      %s153 = int_to_ptr.vmem [resolvable:$true] %s152
      %158 = dma.vmem_to_hbm [thread:$0]  %s153, 256, %s4, [#allocation13], 128, 128, 8
    $region41: #{tpu_custom_call.1} parent=1 // pred_fallthru
      _
    // Predicated region
    $region42: #{tpu_custom_call.1} parent=1 // pred_check
      _
    $region43: #{tpu_custom_call.1} parent=1 // pred_check_branch
      %160 = sbr.rel (0) target = $region45
    $region44: #{tpu_custom_call.1} parent=1 // pred_region
      %s162 = ssub.s32 256, 256
      %163 = vsyncadd [#allocation13], %s162
      %s164 = sshll.u32 [#allocation14], 4
      %s165 = int_to_ptr.vmem [resolvable:$true] %s164
      %170 = dma.vmem_to_hbm [thread:$0]  %s165, 256, %s5, [#allocation13], 128, 128, 8
    $region45: #{tpu_custom_call.1} parent=1 // pred_fallthru
      _
    // Predicated region
    $region46: #{tpu_custom_call.1} parent=1 // pred_check
      _
    $region47: #{tpu_custom_call.1} parent=1 // pred_check_branch
      %172 = sbr.rel (0) target = $region49
    $region48: #{tpu_custom_call.1} parent=1 // pred_region
      %173 = dma.done [#allocation7], 256
    $region49: #{tpu_custom_call.1} parent=1 // pred_fallthru
      _
    // Predicated region
    $region50: #{tpu_custom_call.1} parent=1 // pred_check
      _
    $region51: #{tpu_custom_call.1} parent=1 // pred_check_branch
      %175 = sbr.rel (0) target = $region53
    $region52: #{tpu_custom_call.1} parent=1 // pred_region
      %176 = dma.done [#allocation13], 256
    $region53: #{tpu_custom_call.1} parent=1 // pred_fallthru
      _
    // Predicated region
    $region54: #{tpu_custom_call.1} parent=1 // pred_check
      _
    $region55: #{tpu_custom_call.1} parent=1 // pred_check_branch
      %178 = sbr.rel (0) target = $region57
    $region56: #{tpu_custom_call.1} parent=1 // pred_region
      %179 = dma.done [#allocation13], 256
    $region57: #{tpu_custom_call.1} parent=1 // pred_fallthru
      _
    %180 = vsyncpa [#allocation6], 1
    %181 = vsyncpa [#allocation9], 1
    %182 = vsyncpa [#allocation7], 1
    %183 = vsyncpa [#allocation13], 1

</llo_original>
